<compile_context>
chip_gen: v6e
topology: v6e:2x2x1
jax: 0.10.0
libtpu: 0.0.40
codegen_flags: <defaults>
</compile_context>

<pallas_src>
import functools

import jax
import jax.numpy as jnp
from jax import lax
from jax.experimental import pallas as pl
from jax.experimental.pallas import tpu as pltpu


def _round_down(x, m):
    return (x // m) * m


def _round_up(x, m):
    return ((x + m - 1) // m) * m


def _sublane(itemsize):
    return {4: 8, 2: 16, 1: 32}.get(itemsize, 8)


def _tpu_generation_params():
    """(target_block_bytes, vmem_limit_cap_bytes, num_cores) per TPU generation.

    Detection uses per-core VMEM capacity (v7x-class: 64 MiB & 2 TensorCores;
    v5e/v6e: 128 MiB & 1 TensorCore). Falls back to conservative v5e/v6e
    settings if the query is unavailable.
    """
    vmem_cap = None
    try:
        info = pltpu.get_tpu_info()
        cap = getattr(info, "vmem_capacity_bytes", None)
        if cap:
            vmem_cap = int(cap)
    except Exception:
        vmem_cap = None
    if vmem_cap is not None and vmem_cap <= (64 << 20):
        # v7x-class: smaller VMEM, 2 TCs, ~3.2 TB/s HBM per core.
        return 4 << 20, 28 << 20, 2
    # v5e / v6e class: 128 MiB VMEM, single TensorCore.
    return 8 << 20, 48 << 20, 1


def _choose_fold(rows, cols):
    """Smallest g in [1..8] that folds g channels/row so g*cols % 128 == 0."""
    if cols % 128 == 0:
        return 1
    for g in range(2, 9):
        if (g * cols) % 128 == 0 and rows % g == 0:
            return g
    return 1  # no legal fold: fall back to masked (ragged) stores


def _choose_tiles(rows, cols, dtype, target_bytes, min_row_blocks=1):
    """Pick (row_tile, col_tile): block ~= target_bytes and (sublane, lane)-legal."""
    itemsize = jnp.dtype(dtype).itemsize
    sub = _sublane(itemsize)
    lane = 128

    # Column (lane) tile: prefer the full width (contiguous HBM rows => best DMA);
    # only tile cols when a single sublane-group of rows exceeds the byte budget.
    max_lane_tile = max(lane, _round_down(target_bytes // (sub * itemsize), lane))
    if cols <= max_lane_tile or cols < lane:
        col_tile = cols                      # == full array dim: always legal
    elif cols % lane == 0:
        col_tile = min(cols, max_lane_tile)  # multiple of 128 => unmasked stores
    else:
        col_tile = max_lane_tile             # ragged edge block handled by masking

    # Row (sublane) tile: fill the block budget. The +2*lane term accounts for the
    # lane-padded scale/shift blocks that ride along with every row block.
    per_row_bytes = (col_tile + 2 * lane) * itemsize
    row_budget = max(sub, _round_down(target_bytes // per_row_bytes, sub))
    row_tile = rows if rows <= row_budget else row_budget

    # Multi-TensorCore chips: make sure the row grid has >= min_row_blocks blocks
    # so CORE_PARALLEL can actually shard work across cores.
    if min_row_blocks > 1 and rows > sub and pl.cdiv(rows, row_tile) < min_row_blocks:
        split = _round_up(pl.cdiv(rows, min_row_blocks), sub)
        if split < rows:
            row_tile = split

    return row_tile, col_tile


def _film_kernel(x_ref, scale_ref, shift_ref, o_ref, *, groups, seg):
    """out = scale * x + shift.

    scale/shift are per-row when groups == 1, or per lane-segment of length `seg`
    when groups > 1 (channel-folded lane-dense layout)."""
    x = x_ref[...]
    sv = scale_ref[...]                 # (row_tile, groups)
    tv = shift_ref[...]
    s = sv[:, 0:1]
    t = tv[:, 0:1]
    if groups > 1:
        # Global lane index within the folded row (the col axis may be tiled).
        lane0 = pl.program_id(1) * x.shape[-1]
        lane = lane0 + lax.broadcasted_iota(jnp.int32, x.shape, x.ndim - 1)
        for c in range(1, groups):      # static unroll, groups <= 8 (VPU-cheap)
            m = lane >= c * seg
            s = jnp.where(m, sv[:, c:c + 1], s)
            t = jnp.where(m, tv[:, c:c + 1], t)
    o_ref[...] = s * x + t


def feature_wise_affine(x, scale, shift, *, target_block_bytes=None, donate_x=False):
    """FiLM: out = scale * x + shift.

    x: [B, C, H, W]; scale/shift: [B, C, 1, 1] (or any shape with B*C elements).
    donate_x=True aliases x's buffer as the output (safe because the out and x
    BlockSpecs are identical); the caller must not reuse x afterwards.
    """
    # TODO(synk): only the NCHW x + per-(B, C) FiLM-parameter broadcasting used by
    # the diffusion model is implemented; fully general torch broadcasting is not.
    B, C, H, W = x.shape
    rows = B * C
    cols = H * W
    itemsize = jnp.dtype(x.dtype).itemsize
    sub = _sublane(itemsize)

    auto_block, vmem_cap_limit, num_cores = _tpu_generation_params()
    if target_block_bytes is None:
        target_block_bytes = auto_block

    # Channel folding for lane density when H*W is small / not a multiple of 128.
    g = _choose_fold(rows, cols)
    rows_f = rows // g
    cols_f = cols * g

    x2 = x.reshape(rows_f, cols_f)      # free: contiguous reshape
    s2 = scale.reshape(rows_f, g)
    t2 = shift.reshape(rows_f, g)

    row_tile, col_tile = _choose_tiles(rows_f, cols_f, x.dtype, target_block_bytes,
                                       min_row_blocks=num_cores)
    grid = (pl.cdiv(rows_f, row_tile), pl.cdiv(cols_f, col_tile))

    # VMEM: double-buffered x/out blocks plus the lane-padded scale/shift blocks.
    pad_rows = _round_up(row_tile, sub)
    big_block = pad_rows * _round_up(col_tile, 128) * itemsize
    small_block = pad_rows * 128 * itemsize
    vmem_need = 2 * (2 * big_block + 2 * small_block)
    vmem_limit = min(max(vmem_need + vmem_need // 2, 16 << 20), vmem_cap_limit)
    vmem_limit = int(max(vmem_limit, vmem_need + (1 << 20)))  # never below the need

    cost = pl.CostEstimate(
        flops=2 * rows * cols,
        transcendentals=0,
        bytes_accessed=(2 * rows * cols + 2 * rows) * itemsize,
    )

    kernel = functools.partial(_film_kernel, groups=g, seg=cols)

    def _build(row_sem, col_sem):
        return pl.pallas_call(
            kernel,
            out_shape=jax.ShapeDtypeStruct((rows_f, cols_f), x.dtype),
            grid_spec=pltpu.PrefetchScalarGridSpec(
                num_scalar_prefetch=0,
                grid=grid,
                in_specs=[
                    pl.BlockSpec((row_tile, col_tile), lambda i, j: (i, j)),
                    # scale/shift block index depends only on the row axis => their
                    # DMA is skipped across the inner col loop (resident reuse).
                    pl.BlockSpec((row_tile, g), lambda i, j: (i, 0)),
                    pl.BlockSpec((row_tile, g), lambda i, j: (i, 0)),
                ],
                out_specs=pl.BlockSpec((row_tile, col_tile), lambda i, j: (i, j)),
            ),
            compiler_params=pltpu.CompilerParams(
                dimension_semantics=(row_sem, col_sem),
                vmem_limit_bytes=vmem_limit,
            ),
            cost_estimate=cost,
            input_output_aliases=({0: 0} if donate_x else {}),
        )(x2, s2, t2)

    # v7x: shard the row grid across both TensorCores (mem-bound => up to ~2x).
    # Fall back to portable "parallel" semantics if this path is unavailable.
    if num_cores >= 2 and grid[0] >= 2:
        try:
            out2 = _build(pltpu.CORE_PARALLEL, pltpu.ARBITRARY)
        except Exception:
            out2 = _build("parallel", "arbitrary")
    else:
        out2 = _build("parallel", "arbitrary")

    return out2.reshape(B, C, H, W)


if __name__ == "__main__":
    key = jax.random.PRNGKey(0)

    def _case(B, C, H, W, **kw):
        sub = jax.random.fold_in(key, B * 100000 + C * 10000 + H * 100 + W)
        kx, ks, kt = jax.random.split(sub, 3)
        x = jax.random.normal(kx, (B, C, H, W), dtype=jnp.float32)
        scale = jax.random.normal(ks, (B, C, 1, 1), dtype=jnp.float32)
        shift = jax.random.normal(kt, (B, C, 1, 1), dtype=jnp.float32)
        out = jax.block_until_ready(feature_wise_affine(x, scale, shift, **kw))
        ref = scale * x + shift
        assert out.shape == ref.shape, (out.shape, ref.shape)
        assert jnp.allclose(out, ref, atol=1e-6, rtol=1e-6), (B, C, H, W, kw)

    # Primary shape: H*W = 256 is lane-aligned (g == 1, single block).
    _case(2, 4, 16, 16)
    # Multi-block path: a tiny block budget forces a 2-D grid and exercises the
    # col-axis tiling plus scale/shift reuse across the inner col loop.
    _case(2, 4, 16, 16, target_block_bytes=8 * 128 * 4)
    # Ragged row edge block (rows = 12 is not a multiple of the 8-row tile).
    _case(2, 6, 16, 16, target_block_bytes=8 * 128 * 4)
    # Channel folding for lane density: H*W = 64 -> g = 2, H*W = 32 -> g = 4.
    _case(2, 4, 8, 8)
    _case(2, 4, 8, 4)
    # Small ragged spatial with no legal fold (49 lanes -> masked-store fallback).
    _case(2, 4, 7, 7)

    print("KERNEL_OK")
</pallas_src>

<mosaic_0001>
module attributes {stable_mosaic.version = 11 : i64} {
  func.func @_film_kernel(%arg0: i32, %arg1: i32, %arg2: memref<8x256xf32, #tpu.memory_space<vmem>>, %arg3: memref<8x1xf32, #tpu.memory_space<vmem>>, %arg4: memref<8x1xf32, #tpu.memory_space<vmem>>, %arg5: memref<8x256xf32, #tpu.memory_space<vmem>>) attributes {dimension_semantics = [#tpu.dimension_semantics<parallel>, #tpu.dimension_semantics<arbitrary>], iteration_bounds = array<i64: 1, 1>, scalar_prefetch = 0 : i64, scratch_operands = 0 : i64, tpu.core_type = #tpu.core_type<tc>, window_params = [{transform_indices = @transform_0, window_bounds = array<i64: 8, 256>}, {transform_indices = @transform_1, window_bounds = array<i64: 8, 1>}, {transform_indices = @transform_2, window_bounds = array<i64: 8, 1>}, {transform_indices = @transform_3, window_bounds = array<i64: 8, 256>}]} {
    %c0 = arith.constant 0 : index
    %c0_0 = arith.constant 0 : index
    %0 = vector.load %arg2[%c0, %c0_0] : memref<8x256xf32, #tpu.memory_space<vmem>>, vector<8x256xf32>
    %c0_1 = arith.constant 0 : index
    %c0_2 = arith.constant 0 : index
    %1 = vector.load %arg3[%c0_1, %c0_2] : memref<8x1xf32, #tpu.memory_space<vmem>>, vector<8x1xf32>
    %c0_3 = arith.constant 0 : index
    %c0_4 = arith.constant 0 : index
    %2 = vector.load %arg4[%c0_3, %c0_4] : memref<8x1xf32, #tpu.memory_space<vmem>>, vector<8x1xf32>
    %3 = vector.broadcast %1 : vector<8x1xf32> to vector<8x256xf32>
    %4 = arith.mulf %3, %0 : vector<8x256xf32>
    %5 = vector.broadcast %2 : vector<8x1xf32> to vector<8x256xf32>
    %6 = arith.addf %4, %5 : vector<8x256xf32>
    %c0_5 = arith.constant 0 : index
    %c0_6 = arith.constant 0 : index
    %7 = vector.load %arg5[%c0_5, %c0_6] : memref<8x256xf32, #tpu.memory_space<vmem>>, vector<8x256xf32>
    tpu.vector_store %arg5[%c0_5, %c0_6], %6 {strides = array<i32>} : memref<8x256xf32, #tpu.memory_space<vmem>>, vector<8x256xf32>,
    return
  }
  func.func @transform_0(%arg0: i32, %arg1: i32) -> (i32, i32) {
    %c0_i32 = arith.constant 0 : i32
    return %arg0, %arg1 : i32, i32
  }
  func.func @transform_1(%arg0: i32, %arg1: i32) -> (i32, i32) {
    %c0_i32 = arith.constant 0 : i32
    %c0_i32_0 = arith.constant 0 : i32
    return %arg0, %c0_i32 : i32, i32
  }
  func.func @transform_2(%arg0: i32, %arg1: i32) -> (i32, i32) {
    %c0_i32 = arith.constant 0 : i32
    %c0_i32_0 = arith.constant 0 : i32
    return %arg0, %c0_i32 : i32, i32
  }
  func.func @transform_3(%arg0: i32, %arg1: i32) -> (i32, i32) {
    %c0_i32 = arith.constant 0 : i32
    return %arg0, %arg1 : i32, i32
  }
}

</mosaic_0001>

<llo_original>
// kernel: tpu_custom_call.1
$region0: #{tpu_custom_call.1}
  #allocation0 [shape = 'u32[]', space=smem, size = 0x4, offset = 0x4, fixed_abs, tag = 'smem constant byte address 0x4 - core index']
  #allocation1 [shape = 'u32[144,128]{1,0:T(1,128)}', space=vmem, size = 0x12000, scoped, tag = 'internal scratch']
  %s0 = inlined_call_operand.vmem [shape: f32[8,256], index: 0, kind: input, shape index: {}]
  %s1 = inlined_call_operand.vmem [shape: f32[8,1], index: 1, kind: input, shape index: {}]
  %s2 = inlined_call_operand.vmem [shape: f32[8,1], index: 2, kind: input, shape index: {}]
  %s3 = inlined_call_operand.hbm [shape: f32[8,256], index: 3, kind: output, shape index: {}]
  %s4 = sld [smem:[#allocation0]]
  $region22: #{tpu_custom_call.1} parent=0
    _
  %s6 = ssub.s32 1, %s4
  %s7 = scalar_select 0, %s6, %s4
  $region1: #{tpu_custom_call.1} parent=0
    #allocation2 [shape = 'u8[8192]{0}', space=vmem, size = 0x2000, scoped, tag = 'output window, operand 0, single buffered']
    #allocation3 [shape = 's32[1]{0}', space=sflag, size = 0x4, scoped, tag = 'scoped memory for tpu_custom_call.1']
    %8 = vsyncpa [#allocation3], 0
    // Predicated region
    $region2: #{tpu_custom_call.1} parent=1 // pred_check
      _
    $region3: #{tpu_custom_call.1} parent=1 // pred_check_branch
      %10 = sbr.rel (0) target = $region5
    $region4: #{tpu_custom_call.1} parent=1 // pred_region
      _
    $region5: #{tpu_custom_call.1} parent=1 // pred_fallthru
      _
    // Predicated region
    $region6: #{tpu_custom_call.1} parent=1 // pred_check
      _
    $region7: #{tpu_custom_call.1} parent=1 // pred_check_branch
      %12 = sbr.rel (0) target = $region9
    $region8: #{tpu_custom_call.1} parent=1 // pred_region
      _
    $region9: #{tpu_custom_call.1} parent=1 // pred_fallthru
      _
    // Predicated region
    $region10: #{tpu_custom_call.1} parent=1 // pred_check
      _
    $region11: #{tpu_custom_call.1} parent=1 // pred_check_branch
      %14 = sbr.rel (0) target = $region13
    $region12: #{tpu_custom_call.1} parent=1 // pred_region
      _
    $region13: #{tpu_custom_call.1} parent=1 // pred_fallthru
      _
    %v15 = vld [vmem:[%s0] sm:$0xff]
    %v16 = vld [vmem:[%s0 + $0x8] sm:$0xff]
    %v17 = vld [vmem:[%s1] sm:$0xff]
    %v18 = vld [vmem:[%s2] sm:$0xff]
    %20 = vset.pattern.permute.xlu0 0
    %21 = vperm.xlu0 %20, %v17
    %v22 = vpop.permute.xlu0 %21
    %v24 = vmul.f32 %v22, %v15
    %v25 = vmul.f32 %v22, %v16
    %27 = vset.pattern.permute.xlu0 0
    %28 = vperm.xlu0 %27, %v18
    %v29 = vpop.permute.xlu0 %28
    %v31 = vadd.f32 %v24, %v29
    %v32 = vadd.f32 %v25, %v29
    %33 = vst [vmem:[#allocation2] sm:$0xff] %v31
    %34 = vst [vmem:[#allocation2 + $0x8] sm:$0xff] %v32
    // Predicated region
    $region14: #{tpu_custom_call.1} parent=1 // pred_check
      _
    $region15: #{tpu_custom_call.1} parent=1 // pred_check_branch
      %36 = sbr.rel (0) target = $region17
    $region16: #{tpu_custom_call.1} parent=1 // pred_region
      %s38 = ssub.s32 256, 256
      %39 = vsyncadd [#allocation3], %s38
      %s41 = sshll.u32 [#allocation2], 4
      %s42 = int_to_ptr.vmem [resolvable:$true] %s41
      %44 = dma.vmem_to_hbm [thread:$0]  %s42, 256, %s3, [#allocation3]
    $region17: #{tpu_custom_call.1} parent=1 // pred_fallthru
      _
    // Predicated region
    $region18: #{tpu_custom_call.1} parent=1 // pred_check
      _
    $region19: #{tpu_custom_call.1} parent=1 // pred_check_branch
      %46 = sbr.rel (0) target = $region21
    $region20: #{tpu_custom_call.1} parent=1 // pred_region
      %47 = dma.done [#allocation3], 256
    $region21: #{tpu_custom_call.1} parent=1 // pred_fallthru
      _
    %48 = vsyncpa [#allocation3], 1

</llo_original>
